<compile_context>
chip_gen: v7x
topology: tpu7x:2x2x1
jax: 0.10.0
libtpu: 0.0.40
codegen_flags: <defaults>
</compile_context>

<pallas_src>
import functools

import jax
import jax.numpy as jnp
from jax import lax
from jax.experimental import pallas as pl
from jax.experimental.pallas import tpu as pltpu


def _leaky_relu(x, slope=0.2):
    return jnp.where(x > 0, x, slope * x)


def _round_up(n, m):
    return ((n + m - 1) // m) * m


def _pad_to(a, rows=None, cols=None):
    """Zero-pad a 2-D array to (rows, cols); None keeps the original extent."""
    r = a.shape[0] if rows is None else rows
    c = a.shape[1] if cols is None else cols
    out = jnp.zeros((r, c), a.dtype)
    return out.at[: a.shape[0], : a.shape[1]].set(a)


# ----------------------------------------------------------------------------
# Kernel: full network fused.  Works both gridless (whole batch = one block)
# and gridded (one block_b-row tile of the batch per grid step).
# ----------------------------------------------------------------------------
def generator_kernel(z_ref, labels_ref, w1z_ref, class_rows_ref, b1_ref,
                     w2_ref, b2_ref, w3_ref, b3_ref, w4_ref, b4_ref,
                     o_ref):
    B = z_ref.shape[0]
    C = class_rows_ref.shape[0]        # class_num padded up to a multiple of 8

    # ---- Layer 1: Linear(z_size+class_num -> g0) + LeakyReLU(0.2) -----------
    # Folded embedding + concat:
    #   h1 = z @ w1[:z_size, :] + onehot(labels) @ (label_emb @ w1[z_size:, :]) + b1
    # Both matmuls are bf16 x bf16 with f32 accumulation; b1 is an f32 bias.
    onehot = (labels_ref[...] ==
              lax.broadcasted_iota(jnp.int32, (B, C), 1)).astype(jnp.bfloat16)
    h = jnp.dot(z_ref[...].astype(jnp.bfloat16), w1z_ref[...],
                preferred_element_type=jnp.float32)
    h = h + jnp.dot(onehot, class_rows_ref[...],
                    preferred_element_type=jnp.float32)
    h = _leaky_relu(h + b1_ref[...])

    # ---- Layer 2: Linear + LeakyReLU(0.2) -----------------------------------
    h = jnp.dot(h.astype(jnp.bfloat16), w2_ref[...],
                preferred_element_type=jnp.float32)
    h = _leaky_relu(h + b2_ref[...])

    # ---- Layer 3: Linear + LeakyReLU(0.2) -----------------------------------
    h = jnp.dot(h.astype(jnp.bfloat16), w3_ref[...],
                preferred_element_type=jnp.float32)
    h = _leaky_relu(h + b3_ref[...])

    # ---- Layer 4: Linear + Tanh ---------------------------------------------
    h = jnp.dot(h.astype(jnp.bfloat16), w4_ref[...],
                preferred_element_type=jnp.float32)
    o_ref[...] = jnp.tanh(h + b4_ref[...]).astype(o_ref.dtype)


# ----------------------------------------------------------------------------
# Parameter prep: fold embedding into layer 1, pad to lane-dense widths,
# cast all MXU weights to bf16 (biases stay f32).  Runs once, off hot path.
# ----------------------------------------------------------------------------
def prepare_kernel_params(params, z_size):
    w1, b1 = params["w1"], params["b1"]
    w2, b2 = params["w2"], params["b2"]
    w3, b3 = params["w3"], params["b3"]
    w4, b4 = params["w4"], params["b4"]
    label_emb = params["label_emb"]

    g0p = _round_up(w1.shape[1], 128)
    g1p = _round_up(w2.shape[1], 128)
    g2p = _round_up(w3.shape[1], 128)
    outp = _round_up(w4.shape[1], 128)
    cp = _round_up(label_emb.shape[0], 8)

    # class_rows[c] = label_emb[c] @ w1[z_size:, :]   (bf16, padded; b1 kept f32)
    class_rows = label_emb @ w1[z_size:, :]
    return {
        "w1z": _pad_to(w1[:z_size, :], cols=g0p).astype(jnp.bfloat16),
        "class_rows": _pad_to(class_rows, rows=cp, cols=g0p).astype(jnp.bfloat16),
        "b1": _pad_to(b1, cols=g0p),                                 # f32
        "w2": _pad_to(w2, rows=g0p, cols=g1p).astype(jnp.bfloat16),
        "b2": _pad_to(b2, cols=g1p),                                 # f32
        "w3": _pad_to(w3, rows=g1p, cols=g2p).astype(jnp.bfloat16),
        "b3": _pad_to(b3, cols=g2p),                                 # f32
        "w4": _pad_to(w4, rows=g2p, cols=outp).astype(jnp.bfloat16),
        "b4": _pad_to(b4, cols=outp),                                # f32
    }


# ----------------------------------------------------------------------------
# Forward: mirrors Generator.forward (view, embed, concat, MLP) — fused.
# ----------------------------------------------------------------------------
def generator_forward(z, labels, kparams, out_size, *, block_b=512,
                      slice_output=True):
    z_size = kparams["w1z"].shape[0]
    z = z.reshape(-1, z_size)
    B = z.shape[0]
    labels2 = labels.reshape(B, 1).astype(jnp.int32)
    outp = kparams["w4"].shape[1]

    weight_args = (kparams["w1z"], kparams["class_rows"], kparams["b1"],
                   kparams["w2"], kparams["b2"],
                   kparams["w3"], kparams["b3"],
                   kparams["w4"], kparams["b4"])

    if B <= block_b:
        # Tiny batch: single full-VMEM block, no grid (launch-latency bound).
        vmem = pl.BlockSpec(memory_space=pltpu.MemorySpace.VMEM)
        out = pl.pallas_call(
            generator_kernel,
            out_shape=jax.ShapeDtypeStruct((B, outp), jnp.float32),
            in_specs=[vmem] * (2 + len(weight_args)),
            out_specs=vmem,
        )(z, labels2, *weight_args)
    else:
        # Large batch: stream block_b-row tiles; weights pinned VMEM-resident
        # via constant index_maps; batch axis parallel (v7x megacore).
        rowmap = lambda i: (i, 0)
        const = lambda i: (0, 0)
        in_specs = ([pl.BlockSpec((block_b, z_size), rowmap),
                     pl.BlockSpec((block_b, 1), rowmap)] +
                    [pl.BlockSpec(w.shape, const) for w in weight_args])
        out = pl.pallas_call(
            generator_kernel,
            out_shape=jax.ShapeDtypeStruct((B, outp), jnp.float32),
            grid=(pl.cdiv(B, block_b),),
            in_specs=in_specs,
            out_specs=pl.BlockSpec((block_b, outp), rowmap),
            compiler_params=pltpu.CompilerParams(
                dimension_semantics=("parallel",)),
        )(z, labels2, *weight_args)

    # NOTE: for best perf feed the 128-padded output straight to the consumer
    # (slice_output=False) and pad its first-layer weight rows instead — the
    # slice below is an extra full HBM round trip of the output.
    return out[:, :out_size] if slice_output else out


# ----------------------------------------------------------------------------
# Spec-semantics (PyTorch-equivalent) parameter init + pure-JAX reference.
# ----------------------------------------------------------------------------
def init_params(key, generator_layer_size, z_size, out_size, class_num):
    ks = jax.random.split(key, 5)
    in0 = z_size + class_num
    g0, g1, g2 = generator_layer_size

    def lin(kw, fan_in, fan_out):
        # stored as (in, out) so y = x @ W + b  (== PyTorch x @ W.T + b)
        return jax.random.normal(kw, (fan_in, fan_out), jnp.float32) * 0.05

    return {
        "label_emb": jax.random.normal(ks[0], (class_num, class_num), jnp.float32),
        "w1": lin(ks[1], in0, g0), "b1": jnp.full((1, g0), 0.01, jnp.float32),
        "w2": lin(ks[2], g0, g1),  "b2": jnp.full((1, g1), 0.01, jnp.float32),
        "w3": lin(ks[3], g1, g2),  "b3": jnp.full((1, g2), 0.01, jnp.float32),
        "w4": lin(ks[4], g2, out_size),
        "b4": jnp.full((1, out_size), 0.01, jnp.float32),
    }


def reference_forward(z, labels, params):
    """Pure-JAX f32 reference matching the PyTorch module exactly."""
    z_size = params["w1"].shape[0] - params["label_emb"].shape[1]
    z = z.reshape(-1, z_size)
    c = jnp.take(params["label_emb"], labels, axis=0)
    x = jnp.concatenate([z, c], axis=1)
    h = _leaky_relu(x @ params["w1"] + params["b1"])
    h = _leaky_relu(h @ params["w2"] + params["b2"])
    h = _leaky_relu(h @ params["w3"] + params["b3"])
    return jnp.tanh(h @ params["w4"] + params["b4"])


if __name__ == "__main__":
    # Small shapes consistent with the module.
    generator_layer_size = [64, 128, 128]
    z_size = 32
    out_size = 64
    class_num = 10
    batch = 8

    key = jax.random.PRNGKey(0)
    kp, kz, kl, kz2, kl2 = jax.random.split(key, 5)
    params = init_params(kp, generator_layer_size, z_size, out_size, class_num)
    kparams = prepare_kernel_params(params, z_size)

    # ---- Tiny-batch (gridless) path ----------------------------------------
    z = jax.random.normal(kz, (batch, z_size), jnp.float32)
    labels = jax.random.randint(kl, (batch,), 0, class_num, jnp.int32)

    fwd = jax.jit(functools.partial(generator_forward, out_size=out_size))
    out = jax.block_until_ready(fwd(z, labels, kparams))
    ref = reference_forward(z, labels, params)
    assert out.shape == (batch, out_size)
    assert jnp.allclose(out, ref, atol=3e-3, rtol=2e-2), \
        float(jnp.max(jnp.abs(out - ref)))

    # ---- Large-batch (row-grid, weights resident) path ----------------------
    big_b = 1024
    zb = jax.random.normal(kz2, (big_b, z_size), jnp.float32)
    lb = jax.random.randint(kl2, (big_b,), 0, class_num, jnp.int32)

    fwd_grid = jax.jit(functools.partial(generator_forward, out_size=out_size,
                                         block_b=256))
    out_b = jax.block_until_ready(fwd_grid(zb, lb, kparams))
    ref_b = reference_forward(zb, lb, params)
    assert out_b.shape == (big_b, out_size)
    assert jnp.allclose(out_b, ref_b, atol=3e-3, rtol=2e-2), \
        float(jnp.max(jnp.abs(out_b - ref_b)))

    print("KERNEL_OK")
</pallas_src>

<mosaic_0001>
module attributes {stable_mosaic.version = 11 : i64} {
  func.func @generator_kernel(%arg0: memref<8x32xf32, #tpu.memory_space<vmem>>, %arg1: memref<8x1xi32, #tpu.memory_space<vmem>>, %arg2: memref<32x128xbf16, #tpu.memory_space<vmem>>, %arg3: memref<16x128xbf16, #tpu.memory_space<vmem>>, %arg4: memref<1x128xf32, #tpu.memory_space<vmem>>, %arg5: memref<128x128xbf16, #tpu.memory_space<vmem>>, %arg6: memref<1x128xf32, #tpu.memory_space<vmem>>, %arg7: memref<128x128xbf16, #tpu.memory_space<vmem>>, %arg8: memref<1x128xf32, #tpu.memory_space<vmem>>, %arg9: memref<128x128xbf16, #tpu.memory_space<vmem>>, %arg10: memref<1x128xf32, #tpu.memory_space<vmem>>, %arg11: memref<8x128xf32, #tpu.memory_space<vmem>>) attributes {dimension_semantics = [], scalar_prefetch = 0 : i64, scratch_operands = 0 : i64, tpu.core_type = #tpu.core_type<tc>} {
    %c0 = arith.constant 0 : index
    %c0_0 = arith.constant 0 : index
    %0 = vector.load %arg1[%c0, %c0_0] : memref<8x1xi32, #tpu.memory_space<vmem>>, vector<8x1xi32>
    %1 = tpu.iota {dimensions = array<i32: 1>} : vector<8x16xi32>
    %2 = vector.broadcast %0 : vector<8x1xi32> to vector<8x16xi32>
    %3 = arith.cmpi eq, %2, %1 : vector<8x16xi32>
    %4 = arith.extui %3 : vector<8x16xi1> to vector<8x16xi32>
    %5 = arith.sitofp %4 : vector<8x16xi32> to vector<8x16xf32>
    %6 = arith.truncf %5 : vector<8x16xf32> to vector<8x16xbf16>
    %c0_1 = arith.constant 0 : index
    %c0_2 = arith.constant 0 : index
    %7 = vector.load %arg0[%c0_1, %c0_2] : memref<8x32xf32, #tpu.memory_space<vmem>>, vector<8x32xf32>
    %8 = arith.truncf %7 : vector<8x32xf32> to vector<8x32xbf16>
    %c0_3 = arith.constant 0 : index
    %c0_4 = arith.constant 0 : index
    %9 = vector.load %arg2[%c0_3, %c0_4] : memref<32x128xbf16, #tpu.memory_space<vmem>>, vector<32x128xbf16>
    %cst = arith.constant dense<0.000000e+00> : vector<8x128xf32>
    %10 = tpu.matmul %8, %9, %cst {dimension_numbers = #tpu.dot_dimension_numbers<[1], [0], [0], [1], [0, 0, 1, 1], [], []>} : vector<8x32xbf16>, vector<32x128xbf16>, vector<8x128xf32> -> vector<8x128xf32>
    %c0_5 = arith.constant 0 : index
    %c0_6 = arith.constant 0 : index
    %11 = vector.load %arg3[%c0_5, %c0_6] : memref<16x128xbf16, #tpu.memory_space<vmem>>, vector<16x128xbf16>
    %cst_7 = arith.constant dense<0.000000e+00> : vector<8x128xf32>
    %12 = tpu.matmul %6, %11, %cst_7 {dimension_numbers = #tpu.dot_dimension_numbers<[1], [0], [0], [1], [0, 0, 1, 1], [], []>} : vector<8x16xbf16>, vector<16x128xbf16>, vector<8x128xf32> -> vector<8x128xf32>
    %13 = arith.addf %10, %12 : vector<8x128xf32>
    %c0_8 = arith.constant 0 : index
    %c0_9 = arith.constant 0 : index
    %14 = vector.load %arg4[%c0_8, %c0_9] : memref<1x128xf32, #tpu.memory_space<vmem>>, vector<1x128xf32>
    %15 = vector.broadcast %14 : vector<1x128xf32> to vector<8x128xf32>
    %16 = arith.addf %13, %15 : vector<8x128xf32>
    %cst_10 = arith.constant 0.000000e+00 : f32
    %17 = vector.broadcast %cst_10 : f32 to vector<8x128xf32>
    %18 = arith.cmpf ogt, %16, %17 : vector<8x128xf32>
    %cst_11 = arith.constant 2.000000e-01 : f32
    %19 = vector.broadcast %cst_11 : f32 to vector<8x128xf32>
    %20 = arith.mulf %19, %16 : vector<8x128xf32>
    %21 = arith.select %18, %16, %20 : vector<8x128xi1>, vector<8x128xf32>
    %22 = arith.truncf %21 : vector<8x128xf32> to vector<8x128xbf16>
    %c0_12 = arith.constant 0 : index
    %c0_13 = arith.constant 0 : index
    %23 = vector.load %arg5[%c0_12, %c0_13] : memref<128x128xbf16, #tpu.memory_space<vmem>>, vector<128x128xbf16>
    %cst_14 = arith.constant dense<0.000000e+00> : vector<8x128xf32>
    %24 = tpu.matmul %22, %23, %cst_14 {dimension_numbers = #tpu.dot_dimension_numbers<[1], [0], [0], [1], [0, 0, 1, 1], [], []>} : vector<8x128xbf16>, vector<128x128xbf16>, vector<8x128xf32> -> vector<8x128xf32>
    %c0_15 = arith.constant 0 : index
    %c0_16 = arith.constant 0 : index
    %25 = vector.load %arg6[%c0_15, %c0_16] : memref<1x128xf32, #tpu.memory_space<vmem>>, vector<1x128xf32>
    %26 = vector.broadcast %25 : vector<1x128xf32> to vector<8x128xf32>
    %27 = arith.addf %24, %26 : vector<8x128xf32>
    %cst_17 = arith.constant 0.000000e+00 : f32
    %28 = vector.broadcast %cst_17 : f32 to vector<8x128xf32>
    %29 = arith.cmpf ogt, %27, %28 : vector<8x128xf32>
    %cst_18 = arith.constant 2.000000e-01 : f32
    %30 = vector.broadcast %cst_18 : f32 to vector<8x128xf32>
    %31 = arith.mulf %30, %27 : vector<8x128xf32>
    %32 = arith.select %29, %27, %31 : vector<8x128xi1>, vector<8x128xf32>
    %33 = arith.truncf %32 : vector<8x128xf32> to vector<8x128xbf16>
    %c0_19 = arith.constant 0 : index
    %c0_20 = arith.constant 0 : index
    %34 = vector.load %arg7[%c0_19, %c0_20] : memref<128x128xbf16, #tpu.memory_space<vmem>>, vector<128x128xbf16>
    %cst_21 = arith.constant dense<0.000000e+00> : vector<8x128xf32>
    %35 = tpu.matmul %33, %34, %cst_21 {dimension_numbers = #tpu.dot_dimension_numbers<[1], [0], [0], [1], [0, 0, 1, 1], [], []>} : vector<8x128xbf16>, vector<128x128xbf16>, vector<8x128xf32> -> vector<8x128xf32>
    %c0_22 = arith.constant 0 : index
    %c0_23 = arith.constant 0 : index
    %36 = vector.load %arg8[%c0_22, %c0_23] : memref<1x128xf32, #tpu.memory_space<vmem>>, vector<1x128xf32>
    %37 = vector.broadcast %36 : vector<1x128xf32> to vector<8x128xf32>
    %38 = arith.addf %35, %37 : vector<8x128xf32>
    %cst_24 = arith.constant 0.000000e+00 : f32
    %39 = vector.broadcast %cst_24 : f32 to vector<8x128xf32>
    %40 = arith.cmpf ogt, %38, %39 : vector<8x128xf32>
    %cst_25 = arith.constant 2.000000e-01 : f32
    %41 = vector.broadcast %cst_25 : f32 to vector<8x128xf32>
    %42 = arith.mulf %41, %38 : vector<8x128xf32>
    %43 = arith.select %40, %38, %42 : vector<8x128xi1>, vector<8x128xf32>
    %44 = arith.truncf %43 : vector<8x128xf32> to vector<8x128xbf16>
    %c0_26 = arith.constant 0 : index
    %c0_27 = arith.constant 0 : index
    %45 = vector.load %arg9[%c0_26, %c0_27] : memref<128x128xbf16, #tpu.memory_space<vmem>>, vector<128x128xbf16>
    %cst_28 = arith.constant dense<0.000000e+00> : vector<8x128xf32>
    %46 = tpu.matmul %44, %45, %cst_28 {dimension_numbers = #tpu.dot_dimension_numbers<[1], [0], [0], [1], [0, 0, 1, 1], [], []>} : vector<8x128xbf16>, vector<128x128xbf16>, vector<8x128xf32> -> vector<8x128xf32>
    %c0_29 = arith.constant 0 : index
    %c0_30 = arith.constant 0 : index
    %47 = vector.load %arg10[%c0_29, %c0_30] : memref<1x128xf32, #tpu.memory_space<vmem>>, vector<1x128xf32>
    %48 = vector.broadcast %47 : vector<1x128xf32> to vector<8x128xf32>
    %49 = arith.addf %46, %48 : vector<8x128xf32>
    %50 = math.tanh %49 : vector<8x128xf32>
    %c0_31 = arith.constant 0 : index
    %c0_32 = arith.constant 0 : index
    %51 = vector.load %arg11[%c0_31, %c0_32] : memref<8x128xf32, #tpu.memory_space<vmem>>, vector<8x128xf32>
    tpu.vector_store %arg11[%c0_31, %c0_32], %50 {strides = array<i32>} : memref<8x128xf32, #tpu.memory_space<vmem>>, vector<8x128xf32>,
    return
  }
}

</mosaic_0001>

<llo_original>
// kernel: generator_forward.1
$region0: #{generator_forward.1}
  #allocation0 [shape = 'u32[]', space=smem, size = 0x4, offset = 0x4, fixed_abs, tag = 'smem constant byte address 0x4 - core index']
  #allocation1 [shape = 'u32[144,128]{1,0:T(1,128)}', space=vmem, size = 0x12000, scoped, tag = 'internal scratch']
  %s0 = inlined_call_operand.vmem [shape: f32[8,32], index: 0, kind: input, shape index: {}]
  %s1 = inlined_call_operand.vmem [shape: s32[8,1], index: 1, kind: input, shape index: {}]
  %s2 = inlined_call_operand.vmem [shape: bf16[32,128], index: 2, kind: input, shape index: {}]
  %s3 = inlined_call_operand.vmem [shape: bf16[16,128], index: 3, kind: input, shape index: {}]
  %s4 = inlined_call_operand.vmem [shape: f32[1,128], index: 4, kind: input, shape index: {}]
  %s5 = inlined_call_operand.hbm [shape: bf16[128,128], index: 5, kind: input, shape index: {}]
  %s6 = inlined_call_operand.vmem [shape: f32[1,128], index: 6, kind: input, shape index: {}]
  %s7 = inlined_call_operand.hbm [shape: bf16[128,128], index: 7, kind: input, shape index: {}]
  %s8 = inlined_call_operand.vmem [shape: f32[1,128], index: 8, kind: input, shape index: {}]
  %s9 = inlined_call_operand.hbm [shape: bf16[128,128], index: 9, kind: input, shape index: {}]
  %s10 = inlined_call_operand.hbm [shape: f32[1,128], index: 10, kind: input, shape index: {}]
  %s11 = inlined_call_operand.hbm [shape: f32[8,128], index: 11, kind: output, shape index: {}]
  %s12 = sld [smem:[#allocation0]]
  $region70: #{generator_forward.1} parent=0
    _
  %s14 = ssub.s32 1, %s12
  %s15 = scalar_select 0, %s14, %s12
  $region1: #{generator_forward.1} parent=0
    #allocation2 [shape = 'u8[32768]{0}', space=vmem, size = 0x8000, scoped, tag = 'input window, operand 5, single buffered']
    #allocation3 [shape = 's32[1]{0}', space=sflag, size = 0x4, scoped, tag = 'scoped memory for generator_forward.1']
    #allocation4 [shape = 's32[1]{0}', space=sflag, size = 0x4, scoped, tag = 'scoped memory for generator_forward.1']
    #allocation5 [shape = 'u8[32768]{0}', space=vmem, size = 0x8000, scoped, tag = 'input window, operand 7, single buffered']
    #allocation6 [shape = 's32[1]{0}', space=sflag, size = 0x4, scoped, tag = 'scoped memory for generator_forward.1']
    #allocation7 [shape = 'u8[32768]{0}', space=vmem, size = 0x8000, scoped, tag = 'input window, operand 9, single buffered']
    #allocation8 [shape = 'u8[512]{0}', space=vmem, size = 0x400, scoped, tag = 'input window, operand 10, single buffered']
    #allocation9 [shape = 's32[1]{0}', space=sflag, size = 0x4, scoped, tag = 'scoped memory for generator_forward.1']
    #allocation10 [shape = 'u8[4096]{0}', space=vmem, size = 0x1000, scoped, tag = 'output window, operand 0, single buffered']
    %16 = vsyncpa [#allocation3], 0
    %17 = vsyncpa [#allocation6], 0
    %18 = vsyncpa [#allocation9], 0
    %19 = vsyncpa [#allocation4], 0
    // Predicated region
    $region2: #{generator_forward.1} parent=1 // pred_check
      _
    $region3: #{generator_forward.1} parent=1 // pred_check_branch
      %21 = sbr.rel (0) target = $region5
    $region4: #{generator_forward.1} parent=1 // pred_region
      _
    $region5: #{generator_forward.1} parent=1 // pred_fallthru
      _
    // Predicated region
    $region6: #{generator_forward.1} parent=1 // pred_check
      _
    $region7: #{generator_forward.1} parent=1 // pred_check_branch
      %23 = sbr.rel (0) target = $region9
    $region8: #{generator_forward.1} parent=1 // pred_region
      _
    $region9: #{generator_forward.1} parent=1 // pred_fallthru
      _
    // Predicated region
    $region10: #{generator_forward.1} parent=1 // pred_check
      _
    $region11: #{generator_forward.1} parent=1 // pred_check_branch
      %25 = sbr.rel (0) target = $region13
    $region12: #{generator_forward.1} parent=1 // pred_region
      _
    $region13: #{generator_forward.1} parent=1 // pred_fallthru
      _
    // Predicated region
    $region14: #{generator_forward.1} parent=1 // pred_check
      _
    $region15: #{generator_forward.1} parent=1 // pred_check_branch
      %27 = sbr.rel (0) target = $region17
    $region16: #{generator_forward.1} parent=1 // pred_region
      _
    $region17: #{generator_forward.1} parent=1 // pred_fallthru
      _
    // Predicated region
    $region18: #{generator_forward.1} parent=1 // pred_check
      _
    $region19: #{generator_forward.1} parent=1 // pred_check_branch
      %29 = sbr.rel (0) target = $region21
    $region20: #{generator_forward.1} parent=1 // pred_region
      _
    $region21: #{generator_forward.1} parent=1 // pred_fallthru
      _
    // Predicated region
    $region22: #{generator_forward.1} parent=1 // pred_check
      _
    $region23: #{generator_forward.1} parent=1 // pred_check_branch
      %31 = sbr.rel (0) target = $region25
    $region24: #{generator_forward.1} parent=1 // pred_region
      %s33 = ssub.s32 1024, 1024
      %34 = vsyncadd [#allocation3], %s33
      %s35 = sshll.u32 [#allocation2], 4
      %s36 = int_to_ptr.vmem [resolvable:$true] %s35
      %41 = dma.hbm_to_vmem [thread:$0]  %s5, 1024, %s36, [#allocation3], 64, 64, 4
    $region25: #{generator_forward.1} parent=1 // pred_fallthru
      _
    // Predicated region
    $region26: #{generator_forward.1} parent=1 // pred_check
      _
    $region27: #{generator_forward.1} parent=1 // pred_check_branch
      %43 = sbr.rel (0) target = $region29
    $region28: #{generator_forward.1} parent=1 // pred_region
      _
    $region29: #{generator_forward.1} parent=1 // pred_fallthru
      _
    // Predicated region
    $region30: #{generator_forward.1} parent=1 // pred_check
      _
    $region31: #{generator_forward.1} parent=1 // pred_check_branch
      %45 = sbr.rel (0) target = $region33
    $region32: #{generator_forward.1} parent=1 // pred_region
      %s47 = ssub.s32 1024, 1024
      %48 = vsyncadd [#allocation6], %s47
      %s49 = sshll.u32 [#allocation5], 4
      %s50 = int_to_ptr.vmem [resolvable:$true] %s49
      %55 = dma.hbm_to_vmem [thread:$0]  %s7, 1024, %s50, [#allocation6], 64, 64, 4
    $region33: #{generator_forward.1} parent=1 // pred_fallthru
      _
    // Predicated region
    $region34: #{generator_forward.1} parent=1 // pred_check
      _
    $region35: #{generator_forward.1} parent=1 // pred_check_branch
      %57 = sbr.rel (0) target = $region37
    $region36: #{generator_forward.1} parent=1 // pred_region
      _
    $region37: #{generator_forward.1} parent=1 // pred_fallthru
      _
    // Predicated region
    $region38: #{generator_forward.1} parent=1 // pred_check
      _
    $region39: #{generator_forward.1} parent=1 // pred_check_branch
      %59 = sbr.rel (0) target = $region41
    $region40: #{generator_forward.1} parent=1 // pred_region
      %s61 = ssub.s32 1024, 1024
      %62 = vsyncadd [#allocation6], %s61
      %s63 = sshll.u32 [#allocation7], 4
      %s64 = int_to_ptr.vmem [resolvable:$true] %s63
      %69 = dma.hbm_to_vmem [thread:$0]  %s9, 1024, %s64, [#allocation6], 64, 64, 4
    $region41: #{generator_forward.1} parent=1 // pred_fallthru
      _
    // Predicated region
    $region42: #{generator_forward.1} parent=1 // pred_check
      _
    $region43: #{generator_forward.1} parent=1 // pred_check_branch
      %71 = sbr.rel (0) target = $region45
    $region44: #{generator_forward.1} parent=1 // pred_region
      %s73 = ssub.s32 16, 16
      %74 = vsyncadd [#allocation9], %s73
      %s76 = sshll.u32 [#allocation8], 4
      %s77 = int_to_ptr.vmem [resolvable:$true] %s76
      %79 = dma.hbm_to_vmem [thread:$0]  %s10, 16, %s77, [#allocation9]
    $region45: #{generator_forward.1} parent=1 // pred_fallthru
      _
    // Predicated region
    $region46: #{generator_forward.1} parent=1 // pred_check
      _
    $region47: #{generator_forward.1} parent=1 // pred_check_branch
      %81 = sbr.rel (0) target = $region49
    $region48: #{generator_forward.1} parent=1 // pred_region
      %82 = dma.done [#allocation3], 1024
    $region49: #{generator_forward.1} parent=1 // pred_fallthru
      _
    // Predicated region
    $region50: #{generator_forward.1} parent=1 // pred_check
      _
    $region51: #{generator_forward.1} parent=1 // pred_check_branch
      %84 = sbr.rel (0) target = $region53
    $region52: #{generator_forward.1} parent=1 // pred_region
      %85 = dma.done [#allocation6], 1024
    $region53: #{generator_forward.1} parent=1 // pred_fallthru
      _
    // Predicated region
    $region54: #{generator_forward.1} parent=1 // pred_check
      _
    $region55: #{generator_forward.1} parent=1 // pred_check_branch
      %87 = sbr.rel (0) target = $region57
    $region56: #{generator_forward.1} parent=1 // pred_region
      %88 = dma.done [#allocation6], 1024
    $region57: #{generator_forward.1} parent=1 // pred_fallthru
      _
    // Predicated region
    $region58: #{generator_forward.1} parent=1 // pred_check
      _
    $region59: #{generator_forward.1} parent=1 // pred_check_branch
      %90 = sbr.rel (0) target = $region61
    $region60: #{generator_forward.1} parent=1 // pred_region
      %91 = dma.done [#allocation9], 16
    $region61: #{generator_forward.1} parent=1 // pred_fallthru
      _
    %v93 = vld [vmem:[%s1] sm:$0xff]
    %v94 = vlaneseq
    %v95 = vand.u32 %v94, 127
    %96 = vset.pattern.permute.xlu0 0
    %97 = vperm.xlu0 %96, %v93
    %v98 = vpop.permute.xlu0 %97
    %vm99 = vcmp.eq.s32.totalorder %v98, %v95
    %v100 = vsel %vm99, 1, 0
    %v101 = vcvt.s32.f32 %v100
    %v102 = vpack.c.bf16 %v101, %v101
    %v103 = vld [vmem:[%s0] sm:$0xff]
    %v104 = vpack.c.bf16 %v103, %v103
    %v105 = vld [vmem:[%s2] sm:$0xf]
    %v106 = vld [vmem:[%s2 + $0x4] sm:$0xf]
    %v107 = vld [vmem:[%s2 + $0x8] sm:$0xf]
    %v108 = vld [vmem:[%s2 + $0xc] sm:$0xf]
    %v109 = vld [vmem:[%s3] sm:$0xf]
    %v110 = vld [vmem:[%s3 + $0x4] sm:$0xf]
    %v113 = vunpack.c.l.b16 %v109
    %v114 = vunpack.c.l.b16 %v110
    %v115 = vpack.c.b16 %v114, %v113
    %vm117 = vcmask 130048
    %v119 = vsel %vm117, %v102, 0
    %121 = vmatprep.subr.bf16.mxu0 0
    %122 = vmatpush1.bf16.msra.mxu0 %v115
    %123 = vmatprep.subr.bf16.mxu0 0
    %124 = vmatpush1.bf16.msra.mxu0 0
    %125 = vmatprep.subr.bf16.mxu0 0
    %126 = vmatpush1.bf16.msra.mxu0 0
    %127 = vmatprep.subr.bf16.mxu0 0
    %128 = vmatpush1.bf16.msra.mxu0 0
    %129 = vmatprep.subr.bf16.mxu0 0
    %130 = vmatpush1.bf16.msra.mxu0 0
    %131 = vmatprep.subr.bf16.mxu0 0
    %132 = vmatpush1.bf16.msra.mxu0 0
    %133 = vmatprep.subr.bf16.mxu0 0
    %134 = vmatpush1.bf16.msra.mxu0 0
    %135 = vmatprep.subr.bf16.mxu0 0
    %136 = vmatpush1.bf16.msra.mxu0 0
    %137 = vmatprep.subr.bf16.mxu0 0
    %138 = vmatpush1.bf16.msra.mxu0 0
    %139 = vmatprep.subr.bf16.mxu0 0
    %140 = vmatpush1.bf16.msra.mxu0 0
    %141 = vmatprep.subr.bf16.mxu0 0
    %142 = vmatpush1.bf16.msra.mxu0 0
    %143 = vmatprep.subr.bf16.mxu0 0
    %144 = vmatpush1.bf16.msra.mxu0 0
    %145 = vmatprep.subr.bf16.mxu0 0
    %146 = vmatpush1.bf16.msra.mxu0 0
    %147 = vmatprep.subr.bf16.mxu0 0
    %148 = vmatpush1.bf16.msra.mxu0 0
    %149 = vmatprep.subr.bf16.mxu0 0
    %150 = vmatpush1.bf16.msra.mxu0 0
    %151 = vmatprep.subr.bf16.mxu0 0
    %152 = vmatpush1.bf16.msra.mxu0 0
    %153 = vmatprep.mubr.bf16.mxu0 0
    %154 = vmatmul.mubr.bf16.gmra.mrb[0].mxu0 %v119
    %v155 = vpop.f32.mrb[0].mxu0
    %v156 = vadd.f32 0.0, %v155
    %v157 = vpop.f32.mrb[0].mxu0
    %v158 = vpop.f32.mrb[0].mxu0
    %v159 = vpop.f32.mrb[0].mxu0
    %160 = vdwg.mxu0
    %v165 = vunpack.c.l.b16 %v105
    %v166 = vunpack.c.l.b16 %v106
    %v167 = vunpack.c.l.b16 %v107
    %v168 = vunpack.c.l.b16 %v108
    %v169 = vpack.c.b16 %v166, %v165
    %v170 = vpack.c.b16 %v168, %v167
    %vm173 = vcmask 261120
    %v175 = vsel %vm173, %v104, 0
    %177 = vmatprep.subr.bf16.mxu0 0
    %178 = vmatpush1.bf16.msra.mxu0 %v169
    %179 = vmatprep.subr.bf16.mxu0 0
    %180 = vmatpush1.bf16.msra.mxu0 %v170
    %181 = vmatprep.subr.bf16.mxu0 0
    %182 = vmatpush1.bf16.msra.mxu0 0
    %183 = vmatprep.subr.bf16.mxu0 0
    %184 = vmatpush1.bf16.msra.mxu0 0
    %185 = vmatprep.subr.bf16.mxu0 0
    %186 = vmatpush1.bf16.msra.mxu0 0
    %187 = vmatprep.subr.bf16.mxu0 0
    %188 = vmatpush1.bf16.msra.mxu0 0
    %189 = vmatprep.subr.bf16.mxu0 0
    %190 = vmatpush1.bf16.msra.mxu0 0
    %191 = vmatprep.subr.bf16.mxu0 0
    %192 = vmatpush1.bf16.msra.mxu0 0
    %193 = vmatprep.subr.bf16.mxu0 0
    %194 = vmatpush1.bf16.msra.mxu0 0
    %195 = vmatprep.subr.bf16.mxu0 0
    %196 = vmatpush1.bf16.msra.mxu0 0
    %197 = vmatprep.subr.bf16.mxu0 0
    %198 = vmatpush1.bf16.msra.mxu0 0
    %199 = vmatprep.subr.bf16.mxu0 0
    %200 = vmatpush1.bf16.msra.mxu0 0
    %201 = vmatprep.subr.bf16.mxu0 0
    %202 = vmatpush1.bf16.msra.mxu0 0
    %203 = vmatprep.subr.bf16.mxu0 0
    %204 = vmatpush1.bf16.msra.mxu0 0
    %205 = vmatprep.subr.bf16.mxu0 0
    %206 = vmatpush1.bf16.msra.mxu0 0
    %207 = vmatprep.subr.bf16.mxu0 0
    %208 = vmatpush1.bf16.msra.mxu0 0
    %209 = vmatprep.mubr.bf16.mxu0 0
    %210 = vmatmul.mubr.bf16.gmra.mrb[0].mxu0 %v175
    %v211 = vpop.f32.mrb[0].mxu0
    %v212 = vadd.f32 %v156, %v211
    %v213 = vpop.f32.mrb[0].mxu0
    %v214 = vpop.f32.mrb[0].mxu0
    %v215 = vpop.f32.mrb[0].mxu0
    %216 = vdwg.mxu0
    %v217 = vld [vmem:[%s4] sm:$0x1]
    %v219 = vlaneseq
    %v220 = vshrl.u32 %v219, 7
    %v221 = vsub.s32 0, %v220
    %v222 = vrot.slane %v217, %v221
    %v224 = vadd.f32 %v212, %v222
    %vm225 = vcmp.gt.f32.partialorder %v224, 0.0
    %v226 = vmul.f32 %v224, 0.2
    %v227 = vsel %vm225, %v224, %v226
    %v228 = vpack.c.bf16 %v227, %v227
    %v229 = vld [vmem:[#allocation2] sm:$0xf]
    %v230 = vld [vmem:[#allocation2 + $0x4] sm:$0xf]
    %v231 = vld [vmem:[#allocation2 + $0x8] sm:$0xf]
    %v232 = vld [vmem:[#allocation2 + $0xc] sm:$0xf]
    %v233 = vld [vmem:[#allocation2 + $0x10] sm:$0xf]
    %v234 = vld [vmem:[#allocation2 + $0x14] sm:$0xf]
    %v235 = vld [vmem:[#allocation2 + $0x18] sm:$0xf]
    %v236 = vld [vmem:[#allocation2 + $0x1c] sm:$0xf]
    %v237 = vld [vmem:[#allocation2 + $0x20] sm:$0xf]
    %v238 = vld [vmem:[#allocation2 + $0x24] sm:$0xf]
    %v239 = vld [vmem:[#allocation2 + $0x28] sm:$0xf]
    %v240 = vld [vmem:[#allocation2 + $0x2c] sm:$0xf]
    %v241 = vld [vmem:[#allocation2 + $0x30] sm:$0xf]
    %v242 = vld [vmem:[#allocation2 + $0x34] sm:$0xf]
    %v243 = vld [vmem:[#allocation2 + $0x38] sm:$0xf]
    %v244 = vld [vmem:[#allocation2 + $0x3c] sm:$0xf]
    %v245 = vld [vmem:[%s6] sm:$0x1]
    %v247 = vlaneseq
    %v248 = vshrl.u32 %v247, 7
    %v249 = vsub.s32 0, %v248
    %v250 = vrot.slane %v245, %v249
    %v268 = vunpack.c.l.b16 %v229
    %v269 = vunpack.c.l.b16 %v230
    %v270 = vunpack.c.l.b16 %v231
    %v271 = vunpack.c.l.b16 %v232
    %v272 = vunpack.c.l.b16 %v233
    %v273 = vunpack.c.l.b16 %v234
    %v274 = vunpack.c.l.b16 %v235
    %v275 = vunpack.c.l.b16 %v236
    %v276 = vunpack.c.l.b16 %v237
    %v277 = vunpack.c.l.b16 %v238
    %v278 = vunpack.c.l.b16 %v239
    %v279 = vunpack.c.l.b16 %v240
    %v280 = vunpack.c.l.b16 %v241
    %v281 = vunpack.c.l.b16 %v242
    %v282 = vunpack.c.l.b16 %v243
    %v283 = vunpack.c.l.b16 %v244
    %v284 = vpack.c.b16 %v269, %v268
    %v285 = vpack.c.b16 %v271, %v270
    %v286 = vpack.c.b16 %v273, %v272
    %v287 = vpack.c.b16 %v275, %v274
    %v288 = vpack.c.b16 %v277, %v276
    %v289 = vpack.c.b16 %v279, %v278
    %v290 = vpack.c.b16 %v281, %v280
    %v291 = vpack.c.b16 %v283, %v282
    %300 = vmatprep.subr.bf16.mxu0 0
    %301 = vmatpush1.bf16.msra.mxu0 %v284
    %302 = vmatprep.subr.bf16.mxu0 0
    %303 = vmatpush1.bf16.msra.mxu0 %v285
    %304 = vmatprep.subr.bf16.mxu0 0
    %305 = vmatpush1.bf16.msra.mxu0 %v286
    %306 = vmatprep.subr.bf16.mxu0 0
    %307 = vmatpush1.bf16.msra.mxu0 %v287
    %308 = vmatprep.subr.bf16.mxu0 0
    %309 = vmatpush1.bf16.msra.mxu0 %v288
    %310 = vmatprep.subr.bf16.mxu0 0
    %311 = vmatpush1.bf16.msra.mxu0 %v289
    %312 = vmatprep.subr.bf16.mxu0 0
    %313 = vmatpush1.bf16.msra.mxu0 %v290
    %314 = vmatprep.subr.bf16.mxu0 0
    %315 = vmatpush1.bf16.msra.mxu0 %v291
    %316 = vmatprep.subr.bf16.mxu0 0
    %317 = vmatpush1.bf16.msra.mxu0 0
    %318 = vmatprep.subr.bf16.mxu0 0
    %319 = vmatpush1.bf16.msra.mxu0 0
    %320 = vmatprep.subr.bf16.mxu0 0
    %321 = vmatpush1.bf16.msra.mxu0 0
    %322 = vmatprep.subr.bf16.mxu0 0
    %323 = vmatpush1.bf16.msra.mxu0 0
    %324 = vmatprep.subr.bf16.mxu0 0
    %325 = vmatpush1.bf16.msra.mxu0 0
    %326 = vmatprep.subr.bf16.mxu0 0
    %327 = vmatpush1.bf16.msra.mxu0 0
    %328 = vmatprep.subr.bf16.mxu0 0
    %329 = vmatpush1.bf16.msra.mxu0 0
    %330 = vmatprep.subr.bf16.mxu0 0
    %331 = vmatpush1.bf16.msra.mxu0 0
    %332 = vmatprep.mubr.bf16.mxu0 0
    %333 = vmatmul.mubr.bf16.gmra.mrb[0].mxu0 %v228
    %v334 = vpop.f32.mrb[0].mxu0
    %v335 = vadd.f32 %v250, %v334
    %v336 = vpop.f32.mrb[0].mxu0
    %v337 = vpop.f32.mrb[0].mxu0
    %v338 = vpop.f32.mrb[0].mxu0
    %339 = vdwg.mxu0
    %vm340 = vcmp.gt.f32.partialorder %v335, 0.0
    %v341 = vmul.f32 %v335, 0.2
    %v342 = vsel %vm340, %v335, %v341
    %v343 = vpack.c.bf16 %v342, %v342
    %v344 = vld [vmem:[#allocation5] sm:$0xf]
    %v345 = vld [vmem:[#allocation5 + $0x4] sm:$0xf]
    %v346 = vld [vmem:[#allocation5 + $0x8] sm:$0xf]
    %v347 = vld [vmem:[#allocation5 + $0xc] sm:$0xf]
    %v348 = vld [vmem:[#allocation5 + $0x10] sm:$0xf]
    %v349 = vld [vmem:[#allocation5 + $0x14] sm:$0xf]
    %v350 = vld [vmem:[#allocation5 + $0x18] sm:$0xf]
    %v351 = vld [vmem:[#allocation5 + $0x1c] sm:$0xf]
    %v352 = vld [vmem:[#allocation5 + $0x20] sm:$0xf]
    %v353 = vld [vmem:[#allocation5 + $0x24] sm:$0xf]
    %v354 = vld [vmem:[#allocation5 + $0x28] sm:$0xf]
    %v355 = vld [vmem:[#allocation5 + $0x2c] sm:$0xf]
    %v356 = vld [vmem:[#allocation5 + $0x30] sm:$0xf]
    %v357 = vld [vmem:[#allocation5 + $0x34] sm:$0xf]
    %v358 = vld [vmem:[#allocation5 + $0x38] sm:$0xf]
    %v359 = vld [vmem:[#allocation5 + $0x3c] sm:$0xf]
    %v360 = vld [vmem:[%s8] sm:$0x1]
    %v362 = vlaneseq
    %v363 = vshrl.u32 %v362, 7
    %v364 = vsub.s32 0, %v363
    %v365 = vrot.slane %v360, %v364
    %v383 = vunpack.c.l.b16 %v344
    %v384 = vunpack.c.l.b16 %v345
    %v385 = vunpack.c.l.b16 %v346
    %v386 = vunpack.c.l.b16 %v347
    %v387 = vunpack.c.l.b16 %v348
    %v388 = vunpack.c.l.b16 %v349
    %v389 = vunpack.c.l.b16 %v350
    %v390 = vunpack.c.l.b16 %v351
    %v391 = vunpack.c.l.b16 %v352
    %v392 = vunpack.c.l.b16 %v353
    %v393 = vunpack.c.l.b16 %v354
    %v394 = vunpack.c.l.b16 %v355
    %v395 = vunpack.c.l.b16 %v356
    %v396 = vunpack.c.l.b16 %v357
    %v397 = vunpack.c.l.b16 %v358
    %v398 = vunpack.c.l.b16 %v359
    %v399 = vpack.c.b16 %v384, %v383
    %v400 = vpack.c.b16 %v386, %v385
    %v401 = vpack.c.b16 %v388, %v387
    %v402 = vpack.c.b16 %v390, %v389
    %v403 = vpack.c.b16 %v392, %v391
    %v404 = vpack.c.b16 %v394, %v393
    %v405 = vpack.c.b16 %v396, %v395
    %v406 = vpack.c.b16 %v398, %v397
    %415 = vmatprep.subr.bf16.mxu0 0
    %416 = vmatpush1.bf16.msra.mxu0 %v399
    %417 = vmatprep.subr.bf16.mxu0 0
    %418 = vmatpush1.bf16.msra.mxu0 %v400
    %419 = vmatprep.subr.bf16.mxu0 0
    %420 = vmatpush1.bf16.msra.mxu0 %v401
    %421 = vmatprep.subr.bf16.mxu0 0
    %422 = vmatpush1.bf16.msra.mxu0 %v402
    %423 = vmatprep.subr.bf16.mxu0 0
    %424 = vmatpush1.bf16.msra.mxu0 %v403
    %425 = vmatprep.subr.bf16.mxu0 0
    %426 = vmatpush1.bf16.msra.mxu0 %v404
    %427 = vmatprep.subr.bf16.mxu0 0
    %428 = vmatpush1.bf16.msra.mxu0 %v405
    %429 = vmatprep.subr.bf16.mxu0 0
    %430 = vmatpush1.bf16.msra.mxu0 %v406
    %431 = vmatprep.subr.bf16.mxu0 0
    %432 = vmatpush1.bf16.msra.mxu0 0
    %433 = vmatprep.subr.bf16.mxu0 0
    %434 = vmatpush1.bf16.msra.mxu0 0
    %435 = vmatprep.subr.bf16.mxu0 0
    %436 = vmatpush1.bf16.msra.mxu0 0
    %437 = vmatprep.subr.bf16.mxu0 0
    %438 = vmatpush1.bf16.msra.mxu0 0
    %439 = vmatprep.subr.bf16.mxu0 0
    %440 = vmatpush1.bf16.msra.mxu0 0
    %441 = vmatprep.subr.bf16.mxu0 0
    %442 = vmatpush1.bf16.msra.mxu0 0
    %443 = vmatprep.subr.bf16.mxu0 0
    %444 = vmatpush1.bf16.msra.mxu0 0
    %445 = vmatprep.subr.bf16.mxu0 0
    %446 = vmatpush1.bf16.msra.mxu0 0
    %447 = vmatprep.mubr.bf16.mxu0 0
    %448 = vmatmul.mubr.bf16.gmra.mrb[0].mxu0 %v343
    %v449 = vpop.f32.mrb[0].mxu0
    %v450 = vadd.f32 %v365, %v449
    %v451 = vpop.f32.mrb[0].mxu0
    %v452 = vpop.f32.mrb[0].mxu0
    %v453 = vpop.f32.mrb[0].mxu0
    %454 = vdwg.mxu0
    %vm455 = vcmp.gt.f32.partialorder %v450, 0.0
    %v456 = vmul.f32 %v450, 0.2
    %v457 = vsel %vm455, %v450, %v456
    %v458 = vpack.c.bf16 %v457, %v457
    %v459 = vld [vmem:[#allocation7] sm:$0xf]
    %v460 = vld [vmem:[#allocation7 + $0x4] sm:$0xf]
    %v461 = vld [vmem:[#allocation7 + $0x8] sm:$0xf]
    %v462 = vld [vmem:[#allocation7 + $0xc] sm:$0xf]
    %v463 = vld [vmem:[#allocation7 + $0x10] sm:$0xf]
    %v464 = vld [vmem:[#allocation7 + $0x14] sm:$0xf]
    %v465 = vld [vmem:[#allocation7 + $0x18] sm:$0xf]
    %v466 = vld [vmem:[#allocation7 + $0x1c] sm:$0xf]
    %v467 = vld [vmem:[#allocation7 + $0x20] sm:$0xf]
    %v468 = vld [vmem:[#allocation7 + $0x24] sm:$0xf]
    %v469 = vld [vmem:[#allocation7 + $0x28] sm:$0xf]
    %v470 = vld [vmem:[#allocation7 + $0x2c] sm:$0xf]
    %v471 = vld [vmem:[#allocation7 + $0x30] sm:$0xf]
    %v472 = vld [vmem:[#allocation7 + $0x34] sm:$0xf]
    %v473 = vld [vmem:[#allocation7 + $0x38] sm:$0xf]
    %v474 = vld [vmem:[#allocation7 + $0x3c] sm:$0xf]
    %v475 = vld [vmem:[#allocation8] sm:$0x1]
    %v477 = vlaneseq
    %v478 = vshrl.u32 %v477, 7
    %v479 = vsub.s32 0, %v478
    %v480 = vrot.slane %v475, %v479
    %v498 = vunpack.c.l.b16 %v459
    %v499 = vunpack.c.l.b16 %v460
    %v500 = vunpack.c.l.b16 %v461
    %v501 = vunpack.c.l.b16 %v462
    %v502 = vunpack.c.l.b16 %v463
    %v503 = vunpack.c.l.b16 %v464
    %v504 = vunpack.c.l.b16 %v465
    %v505 = vunpack.c.l.b16 %v466
    %v506 = vunpack.c.l.b16 %v467
    %v507 = vunpack.c.l.b16 %v468
    %v508 = vunpack.c.l.b16 %v469
    %v509 = vunpack.c.l.b16 %v470
    %v510 = vunpack.c.l.b16 %v471
    %v511 = vunpack.c.l.b16 %v472
    %v512 = vunpack.c.l.b16 %v473
    %v513 = vunpack.c.l.b16 %v474
    %v514 = vpack.c.b16 %v499, %v498
    %v515 = vpack.c.b16 %v501, %v500
    %v516 = vpack.c.b16 %v503, %v502
    %v517 = vpack.c.b16 %v505, %v504
    %v518 = vpack.c.b16 %v507, %v506
    %v519 = vpack.c.b16 %v509, %v508
    %v520 = vpack.c.b16 %v511, %v510
    %v521 = vpack.c.b16 %v513, %v512
    %530 = vmatprep.subr.bf16.mxu0 0
    %531 = vmatpush1.bf16.msra.mxu0 %v514
    %532 = vmatprep.subr.bf16.mxu0 0
    %533 = vmatpush1.bf16.msra.mxu0 %v515
    %534 = vmatprep.subr.bf16.mxu0 0
    %535 = vmatpush1.bf16.msra.mxu0 %v516
    %536 = vmatprep.subr.bf16.mxu0 0
    %537 = vmatpush1.bf16.msra.mxu0 %v517
    %538 = vmatprep.subr.bf16.mxu0 0
    %539 = vmatpush1.bf16.msra.mxu0 %v518
    %540 = vmatprep.subr.bf16.mxu0 0
    %541 = vmatpush1.bf16.msra.mxu0 %v519
    %542 = vmatprep.subr.bf16.mxu0 0
    %543 = vmatpush1.bf16.msra.mxu0 %v520
    %544 = vmatprep.subr.bf16.mxu0 0
    %545 = vmatpush1.bf16.msra.mxu0 %v521
    %546 = vmatprep.subr.bf16.mxu0 0
    %547 = vmatpush1.bf16.msra.mxu0 0
    %548 = vmatprep.subr.bf16.mxu0 0
    %549 = vmatpush1.bf16.msra.mxu0 0
    %550 = vmatprep.subr.bf16.mxu0 0
    %551 = vmatpush1.bf16.msra.mxu0 0
    %552 = vmatprep.subr.bf16.mxu0 0
    %553 = vmatpush1.bf16.msra.mxu0 0
    %554 = vmatprep.subr.bf16.mxu0 0
    %555 = vmatpush1.bf16.msra.mxu0 0
    %556 = vmatprep.subr.bf16.mxu0 0
    %557 = vmatpush1.bf16.msra.mxu0 0
    %558 = vmatprep.subr.bf16.mxu0 0
    %559 = vmatpush1.bf16.msra.mxu0 0
    %560 = vmatprep.subr.bf16.mxu0 0
    %561 = vmatpush1.bf16.msra.mxu0 0
    %562 = vmatprep.mubr.bf16.mxu0 0
    %563 = vmatmul.mubr.bf16.gmra.mrb[0].mxu0 %v458
    %v564 = vpop.f32.mrb[0].mxu0
    %v565 = vadd.f32 %v480, %v564
    %v566 = vpop.f32.mrb[0].mxu0
    %v567 = vpop.f32.mrb[0].mxu0
    %v568 = vpop.f32.mrb[0].mxu0
    %569 = vdwg.mxu0
    %v570 = vtanh.pop %v565
    %571 = vst [vmem:[#allocation10] sm:$0xff] %v570
    // Predicated region
    $region62: #{generator_forward.1} parent=1 // pred_check
      _
    $region63: #{generator_forward.1} parent=1 // pred_check_branch
      %573 = sbr.rel (0) target = $region65
    $region64: #{generator_forward.1} parent=1 // pred_region
      %s575 = ssub.s32 128, 128
      %576 = vsyncadd [#allocation4], %s575
      %s578 = sshll.u32 [#allocation10], 4
      %s579 = int_to_ptr.vmem [resolvable:$true] %s578
      %581 = dma.vmem_to_hbm [thread:$0]  %s579, 128, %s11, [#allocation4]
    $region65: #{generator_forward.1} parent=1 // pred_fallthru
      _
    // Predicated region
    $region66: #{generator_forward.1} parent=1 // pred_check
      _
    $region67: #{generator_forward.1} parent=1 // pred_check_branch
      %583 = sbr.rel (0) target = $region69
    $region68: #{generator_forward.1} parent=1 // pred_region
      %584 = dma.done [#allocation4], 128
    $region69: #{generator_forward.1} parent=1 // pred_fallthru
      _
    %585 = vsyncpa [#allocation3], 1
    %586 = vsyncpa [#allocation6], 1
    %587 = vsyncpa [#allocation9], 1
    %588 = vsyncpa [#allocation4], 1

</llo_original>
